<compile_context>
chip_gen: v7x
topology: tpu7x:2x2x1
jax: 0.10.0
libtpu: 0.0.40
codegen_flags: <defaults>
</compile_context>

<pallas_src>
import jax
import jax.numpy as jnp
from jax.experimental import pallas as pl
from jax.experimental.pallas import tpu as pltpu

_LANE = 128
_SMALL_RAGGED_MAX = 32 * 1024  # elements; cap for the (1, n) full-block path


def _cdiv(a, b):
    return (a + b - 1) // b


def _round_up(a, b):
    return ((a + b - 1) // b) * b


def _make_mish_kernel(use_approx_recip):
    def kernel(x_ref, o_ref):
        x = x_ref[...].astype(jnp.float32)
        # tanh(softplus(x)) = u / (u + 2), u = t*(t+2), t = exp(x).
        # The clamp at 20 (PyTorch softplus threshold) keeps exp finite; for
        # x >= ~9, u/(u+2) rounds to exactly 1.0 in f32 so x*(u/(u+2)) == x
        # and no explicit passthrough select is needed.  Clamp MUST stay.
        t = jnp.exp(jnp.minimum(x, 20.0))
        u = t * (t + 2.0)
        if use_approx_recip:
            # EUP approximate reciprocal: moves the divide off the VALU slot.
            y = x * (u * pl.reciprocal(u + 2.0, approx=True))
        else:
            # Exact divide for f32 outputs (preserves 1e-5 tolerance).
            y = x * (u / (u + 2.0))
        o_ref[...] = y.astype(o_ref.dtype)

    return kernel


def _block_budget_elems_and_two_tc():
    """Return (f32-element block budget, chip-has-two-TensorCores)."""
    try:
        kind = jax.devices()[0].device_kind.lower()
    except Exception:
        kind = ""
    if "v6" in kind:
        # v6e: 32 MiB default scoped VMEM -> 4 MiB blocks (in+out double
        # buffered = 16 MiB), measured ~86-87% of HBM roofline.
        return (4 * 1024 * 1024) // 4, False
    if "v7" in kind or "7x" in kind:
        # v7x: 64 MiB physical / 32 MiB default scoped VMEM per TC; 4 MiB
        # blocks keep in+out double-buffering at 16 MiB.  Two TCs per chip.
        return (4 * 1024 * 1024) // 4, True
    # v5e (16 MiB default scoped VMEM) and unknown chips: stay at 2 MiB.
    return (2 * 1024 * 1024) // 4, False


def _mish_slab(slab, *, allow_input_fusion=False):
    """Run the Mish kernel over a 2D slab (rows, lane_w), tiled along rows."""
    rows, lane_w = slab.shape
    dtype = slab.dtype
    itemsize = jnp.dtype(dtype).itemsize
    # Minimum second-to-last tile multiple: 8 (f32), 16 (bf16), 32 (int8/fp8).
    sublane_pack = 8 * max(1, 4 // itemsize)
    block_elems, two_tc = _block_budget_elems_and_two_tc()

    if rows <= sublane_pack:
        row_tile = rows  # block dim equals full array dim (always legal)
    else:
        row_tile = max(sublane_pack,
                       (block_elems // lane_w) // sublane_pack * sublane_pack)
        row_tile = min(row_tile, _round_up(rows, sublane_pack))
        if two_tc:
            # Two TensorCores per chip: keep enough (preferably >= 4) grid
            # steps on the "parallel" axis so the work can shard across TCs.
            # TODO(synk): if "parallel" is found not to shard across v7x TCs,
            # switch the leading axis to pltpu.CORE_PARALLEL / pl.core_map.
            min_blocks = 4 if rows >= 4 * sublane_pack else 2
            if _cdiv(rows, row_tile) < min_blocks:
                row_tile = max(sublane_pack,
                               _round_up(_cdiv(rows, min_blocks), sublane_pack))
    num_blocks = _cdiv(rows, row_tile)

    kernel = _make_mish_kernel(use_approx_recip=(itemsize < 4))
    return pl.pallas_call(
        kernel,
        out_shape=jax.ShapeDtypeStruct((rows, lane_w), dtype),
        grid_spec=pltpu.PrefetchScalarGridSpec(
            num_scalar_prefetch=0,
            grid=(num_blocks,),
            in_specs=[pl.BlockSpec((row_tile, lane_w), lambda i: (i, 0))],
            out_specs=pl.BlockSpec((row_tile, lane_w), lambda i: (i, 0)),
        ),
        compiler_params=pltpu.CompilerParams(
            dimension_semantics=("parallel",),
            allow_input_fusion=[True] if allow_input_fusion else None,
        ),
    )(slab)


def mish(x):
    """Elementwise Mish, matching torch: x * tanh(softplus(x))."""
    orig_shape = x.shape
    dtype = x.dtype
    if not jnp.issubdtype(dtype, jnp.floating):
        raise TypeError(f"mish: floating-point input required, got {dtype}")
    flat = x.reshape(-1)
    n = flat.shape[0]
    if n == 0:
        return x

    itemsize = jnp.dtype(dtype).itemsize
    sublane_pack = 8 * max(1, 4 // itemsize)

    if n % _LANE == 0:
        # Zero-copy path (the common conv-activation case): widest lane-dense
        # last dim that divides n and leaves at least one packed row group.
        lane_w = _LANE
        for w in (2048, 1024, 512, 256, _LANE):
            if n % w == 0 and n // w >= sublane_pack:
                lane_w = w
                break
        out = _mish_slab(flat.reshape(n // lane_w, lane_w))
        return out.reshape(orig_shape)

    if n <= _SMALL_RAGGED_MAX:
        # Small ragged n: a single full-array (1, n) block.  Still zero-copy;
        # no pad / prefix-slice HBM round trips.
        out = _mish_slab(flat.reshape(1, n))
        return out.reshape(orig_shape)

    # Large ragged n (rare): minimal pad to a multiple of 128.  With
    # allow_input_fusion XLA may fuse the pad into the kernel's input DMA so
    # it does not cost a separate HBM pass; the output prefix-slice remains.
    # TODO(synk): a fully copy-free ragged path would require fusing Mish into
    # the producing op's epilogue rather than a standalone activation pass.
    pad = (-n) % _LANE
    padded = jnp.pad(flat, (0, pad))
    out = _mish_slab(padded.reshape((n + pad) // _LANE, _LANE),
                     allow_input_fusion=True)
    return out.reshape(-1)[:n].reshape(orig_shape)


def _mish_ref(x):
    xf = x.astype(jnp.float32)
    sp = jnp.where(xf > 20.0, xf, jnp.log1p(jnp.exp(jnp.minimum(xf, 20.0))))
    return xf * jnp.tanh(sp)


if __name__ == "__main__":
    key = jax.random.PRNGKey(0)
    k0, k1, k2 = jax.random.split(key, 3)

    # 1) NCHW conv activation, f32 (zero-copy lane-dense path).
    x = jax.random.normal(k0, (2, 4, 16, 16), dtype=jnp.float32) * 3.0
    x = x.at[0, 0, 0, 0].set(30.0)   # above the softplus threshold
    x = x.at[0, 0, 0, 1].set(-30.0)  # deep negative tail
    y = mish(x)
    jax.block_until_ready(y)
    assert y.shape == x.shape and y.dtype == x.dtype
    assert jnp.allclose(y, _mish_ref(x).astype(x.dtype), atol=1e-5, rtol=1e-5)

    # 2) Ragged element count (7*13*5 = 455, not a multiple of 128):
    #    exercises the pad-free single-block ragged path.
    xr = jax.random.normal(k1, (7, 13, 5), dtype=jnp.float32) * 3.0
    xr = xr.at[0, 0, 0].set(25.0)
    yr = mish(xr)
    jax.block_until_ready(yr)
    assert yr.shape == xr.shape and yr.dtype == xr.dtype
    assert jnp.allclose(yr, _mish_ref(xr).astype(xr.dtype), atol=1e-5, rtol=1e-5)

    # 3) bf16 activations: exercises the approx-reciprocal (EUP) variant.
    xb = (jax.random.normal(k2, (2, 8, 8, 32), dtype=jnp.float32) * 3.0
          ).astype(jnp.bfloat16)
    yb = mish(xb)
    jax.block_until_ready(yb)
    assert yb.shape == xb.shape and yb.dtype == xb.dtype
    assert jnp.allclose(yb.astype(jnp.float32), _mish_ref(xb),
                        atol=1e-2, rtol=2e-2)

    print("KERNEL_OK")
</pallas_src>

<mosaic_0001>
module attributes {stable_mosaic.version = 11 : i64} {
  func.func @kernel(%arg0: i32, %arg1: memref<8x256xf32, #tpu.memory_space<vmem>>, %arg2: memref<8x256xf32, #tpu.memory_space<vmem>>) attributes {dimension_semantics = [#tpu.dimension_semantics<parallel>], iteration_bounds = array<i64: 1>, scalar_prefetch = 0 : i64, scratch_operands = 0 : i64, tpu.core_type = #tpu.core_type<tc>, window_params = [{transform_indices = @transform_0, window_bounds = array<i64: 8, 256>}, {transform_indices = @transform_1, window_bounds = array<i64: 8, 256>}]} {
    %c0 = arith.constant 0 : index
    %c0_0 = arith.constant 0 : index
    %0 = vector.load %arg1[%c0, %c0_0] : memref<8x256xf32, #tpu.memory_space<vmem>>, vector<8x256xf32>
    %cst = arith.constant 2.000000e+01 : f32
    %1 = vector.broadcast %cst : f32 to vector<8x256xf32>
    %2 = arith.minimumf %0, %1 : vector<8x256xf32>
    %3 = math.exp %2 : vector<8x256xf32>
    %cst_1 = arith.constant 2.000000e+00 : f32
    %4 = vector.broadcast %cst_1 : f32 to vector<8x256xf32>
    %5 = arith.addf %3, %4 : vector<8x256xf32>
    %6 = arith.mulf %3, %5 : vector<8x256xf32>
    %cst_2 = arith.constant 2.000000e+00 : f32
    %7 = vector.broadcast %cst_2 : f32 to vector<8x256xf32>
    %8 = arith.addf %6, %7 : vector<8x256xf32>
    %9 = arith.divf %6, %8 : vector<8x256xf32>
    %10 = arith.mulf %0, %9 : vector<8x256xf32>
    %c0_3 = arith.constant 0 : index
    %c0_4 = arith.constant 0 : index
    %11 = vector.load %arg2[%c0_3, %c0_4] : memref<8x256xf32, #tpu.memory_space<vmem>>, vector<8x256xf32>
    tpu.vector_store %arg2[%c0_3, %c0_4], %10 {strides = array<i32>} : memref<8x256xf32, #tpu.memory_space<vmem>>, vector<8x256xf32>,
    return
  }
  func.func @transform_0(%arg0: i32) -> (i32, i32) {
    %c0_i32 = arith.constant 0 : i32
    %c0_i32_0 = arith.constant 0 : i32
    return %arg0, %c0_i32 : i32, i32
  }
  func.func @transform_1(%arg0: i32) -> (i32, i32) {
    %c0_i32 = arith.constant 0 : i32
    %c0_i32_0 = arith.constant 0 : i32
    return %arg0, %c0_i32 : i32, i32
  }
}

</mosaic_0001>

<llo_original>
// kernel: tpu_custom_call.1
$region0: #{tpu_custom_call.1}
  #allocation0 [shape = 'u32[]', space=smem, size = 0x4, offset = 0x4, fixed_abs, tag = 'smem constant byte address 0x4 - core index']
  #allocation1 [shape = 'u32[144,128]{1,0:T(1,128)}', space=vmem, size = 0x12000, scoped, tag = 'internal scratch']
  %s0 = inlined_call_operand.hbm [shape: f32[8,256], index: 0, kind: input, shape index: {}]
  %s1 = inlined_call_operand.hbm [shape: f32[8,256], index: 1, kind: output, shape index: {}]
  %s2 = sld [smem:[#allocation0]]
  $region18: #{tpu_custom_call.1} parent=0
    _
  %s4 = ssub.s32 1, %s2
  %s5 = scalar_select 0, %s4, %s2
  $region1: #{tpu_custom_call.1} parent=0
    #allocation2 [shape = 'u8[8192]{0}', space=vmem, size = 0x2000, scoped, tag = 'input window, operand 0, single buffered']
    #allocation3 [shape = 's32[1]{0}', space=sflag, size = 0x4, scoped, tag = 'scoped memory for tpu_custom_call.1']
    #allocation4 [shape = 's32[1]{0}', space=sflag, size = 0x4, scoped, tag = 'scoped memory for tpu_custom_call.1']
    #allocation5 [shape = 'u8[8192]{0}', space=vmem, size = 0x2000, scoped, tag = 'output window, operand 0, single buffered']
    %6 = vsyncpa [#allocation3], 0
    %7 = vsyncpa [#allocation4], 0
    // Predicated region
    $region2: #{tpu_custom_call.1} parent=1 // pred_check
      _
    $region3: #{tpu_custom_call.1} parent=1 // pred_check_branch
      %9 = sbr.rel (0) target = $region5
    $region4: #{tpu_custom_call.1} parent=1 // pred_region
      %s11 = ssub.s32 256, 256
      %12 = vsyncadd [#allocation3], %s11
      %s14 = sshll.u32 [#allocation2], 4
      %s15 = int_to_ptr.vmem [resolvable:$true] %s14
      %17 = dma.hbm_to_vmem [thread:$0]  %s0, 256, %s15, [#allocation3]
    $region5: #{tpu_custom_call.1} parent=1 // pred_fallthru
      _
    // Predicated region
    $region6: #{tpu_custom_call.1} parent=1 // pred_check
      _
    $region7: #{tpu_custom_call.1} parent=1 // pred_check_branch
      %19 = sbr.rel (0) target = $region9
    $region8: #{tpu_custom_call.1} parent=1 // pred_region
      %20 = dma.done [#allocation3], 256
    $region9: #{tpu_custom_call.1} parent=1 // pred_fallthru
      _
    %v21 = vld [vmem:[#allocation2] sm:$0xff]
    %v22 = vld [vmem:[#allocation2 + $0x8] sm:$0xff]
    %v23 = vmin.f32 %v21, 20.0
    %v24 = vmin.f32 %v22, 20.0
    %v25 = vmul.f32 %v23, 1.442695
    %v26 = vpow.pop %v25
    %v27 = vmul.f32 %v24, 1.442695
    %v28 = vpow.pop %v27
    %v29 = vadd.f32 %v26, 2.0
    %v30 = vadd.f32 %v28, 2.0
    %v31 = vmul.f32 %v26, %v29
    %v32 = vmul.f32 %v28, %v30
    %v33 = vadd.f32 %v31, 2.0
    %v34 = vadd.f32 %v32, 2.0
    %v35 = vrcp.pop %v33
    %v36 = vmul.f32 %v31, %v35
    %v37 = vrcp.pop %v34
    %v38 = vmul.f32 %v32, %v37
    %v39 = vmul.f32 %v21, %v36
    %v40 = vmul.f32 %v22, %v38
    %41 = vst [vmem:[#allocation5] sm:$0xff] %v39
    %42 = vst [vmem:[#allocation5 + $0x8] sm:$0xff] %v40
    // Predicated region
    $region10: #{tpu_custom_call.1} parent=1 // pred_check
      _
    $region11: #{tpu_custom_call.1} parent=1 // pred_check_branch
      %44 = sbr.rel (0) target = $region13
    $region12: #{tpu_custom_call.1} parent=1 // pred_region
      %s46 = ssub.s32 256, 256
      %47 = vsyncadd [#allocation4], %s46
      %s49 = sshll.u32 [#allocation5], 4
      %s50 = int_to_ptr.vmem [resolvable:$true] %s49
      %52 = dma.vmem_to_hbm [thread:$0]  %s50, 256, %s1, [#allocation4]
    $region13: #{tpu_custom_call.1} parent=1 // pred_fallthru
      _
    // Predicated region
    $region14: #{tpu_custom_call.1} parent=1 // pred_check
      _
    $region15: #{tpu_custom_call.1} parent=1 // pred_check_branch
      %54 = sbr.rel (0) target = $region17
    $region16: #{tpu_custom_call.1} parent=1 // pred_region
      %55 = dma.done [#allocation4], 256
    $region17: #{tpu_custom_call.1} parent=1 // pred_fallthru
      _
    %56 = vsyncpa [#allocation3], 1
    %57 = vsyncpa [#allocation4], 1

</llo_original>
